<compile_context>
chip_gen: v7x
topology: tpu7x:2x2x1
jax: 0.10.0
libtpu: 0.0.40
codegen_flags: <defaults>
</compile_context>

<pallas_src>
import functools

import jax
import jax.numpy as jnp
from jax import lax
from jax.experimental import pallas as pl
from jax.experimental.pallas import tpu as pltpu

PAD = 0
SMOOTH_EPS = 0.1


def _round_up(x, m):
    return (x + m - 1) // m * m


def _device_defaults():
    """Return (row_tile, vmem_limit_bytes, cores_on_parallel_axis)."""
    kind = ""
    try:
        kind = jax.devices()[0].device_kind.lower()
    except Exception:
        pass
    if "v7" in kind:                          # 64 MiB physical VMEM, 2 TCs/chip
        return 256, 48 * 1024 * 1024, 2
    if "v6" in kind or "trillium" in kind:    # 128 MiB VMEM, 1 TC
        return 512, 96 * 1024 * 1024, 1
    if "v5" in kind:                          # v5e: compute-bound from tn ~256
        return 256, 96 * 1024 * 1024, 1
    return 256, 48 * 1024 * 1024, 1           # conservative fallback


def _loss_kernel(gold_ref, x_ref, w_ref, b_ref, *refs,
                 nv, tv, v_total, need_pred):
    """Grid = (row_tiles, 2*nv) if need_pred else (row_tiles, nv).

    j < nv : bf16 matmul + online log-softmax statistics (no logits stash).
    j >= nv: recompute the logits tile and emit normalized log-probs.
    """
    if need_pred:
        pred_ref, stats_ref, m_ref, l_ref, g_ref, s_ref = refs
    else:
        pred_ref = None
        stats_ref, m_ref, l_ref, g_ref, s_ref = refs

    j = pl.program_id(1)

    # ---- phase 0 init (start of each row tile) -------------------------------
    @pl.when(j == 0)
    def _init():
        m_ref[...] = jnp.full_like(m_ref, -1e30)   # running max
        l_ref[...] = jnp.zeros_like(l_ref)         # running sum exp(logit - m)
        g_ref[...] = jnp.zeros_like(g_ref)         # gold logit
        s_ref[...] = jnp.zeros_like(s_ref)         # sum of logits (for the mean)

    # ---- phase 0: matmul + online log-softmax statistics ---------------------
    @pl.when(j < nv)
    def _accumulate():
        # bf16 x bf16 -> f32 on the MXU; softmax math stays f32 on VPU/EUP.
        logits = jnp.dot(x_ref[...], w_ref[...],
                         preferred_element_type=jnp.float32) + b_ref[...]
        tn = logits.shape[0]
        gold = gold_ref[...]                        # [tn, 1] int32
        col = j * tv + lax.broadcasted_iota(jnp.int32, (tn, tv), 1)

        m_prev = m_ref[...]
        m_new = jnp.maximum(m_prev, jnp.max(logits, axis=-1, keepdims=True))
        l_ref[...] = (l_ref[...] * jnp.exp(m_prev - m_new)
                      + jnp.sum(jnp.exp(logits - m_new), axis=-1, keepdims=True))
        m_ref[...] = m_new
        s_ref[...] = s_ref[...] + jnp.sum(logits, axis=-1, keepdims=True)
        g_ref[...] = g_ref[...] + jnp.sum(
            jnp.where(col == gold, logits, 0.0), axis=-1, keepdims=True)

    # ---- end of phase 0: emit per-row-tile loss partials, lane-dense ---------
    @pl.when(j == nv - 1)
    def _finalize_stats():
        lse = m_ref[...] + jnp.log(l_ref[...])                       # [tn, 1]
        gold = gold_ref[...]
        non_pad = (gold != PAD).astype(jnp.float32)
        nll_sum = jnp.sum(-(g_ref[...] - lse) * non_pad)             # scalar
        smooth_sum = jnp.sum((s_ref[...] * (1.0 / v_total) - lse) * non_pad)
        lane = lax.broadcasted_iota(jnp.int32, (1, 8, 128), 2)
        sub = lax.broadcasted_iota(jnp.int32, (1, 8, 128), 1)
        vals = jnp.where(lane == 0, nll_sum,
                         jnp.where(lane == 1, smooth_sum, 0.0))
        stats_ref[...] = jnp.where(sub == 0, vals, 0.0)

    # ---- phase 1: recompute logits tile, write normalized log-probs ----------
    if need_pred:
        @pl.when(j >= nv)
        def _emit_pred():
            logits = jnp.dot(x_ref[...], w_ref[...],
                             preferred_element_type=jnp.float32) + b_ref[...]
            lse = m_ref[...] + jnp.log(l_ref[...])
            pred_ref[...] = (logits - lse).astype(pred_ref.dtype)


def fused_logsoftmax_nll(x, w, b, gold, *, tn=None, tv=None,
                         need_pred=True, pred_dtype=jnp.float32,
                         compute_dtype=jnp.bfloat16, vmem_limit_bytes=None):
    """x: [N, D] f32, w: [D, V] f32, b: [1, V] f32, gold: [N] int.

    Returns (log_probs [N, V] (or None), nll_sum scalar, smooth_sum scalar)
    where nll_sum = sum of -logp[gold] over non-PAD rows and
          smooth_sum = sum of mean(logp, -1) over non-PAD rows.
    """
    N, D = x.shape
    V = w.shape[1]
    assert V % 128 == 0, "vocab must be lane-aligned (pad V to a multiple of 128)"

    tn_default, vmem_default, n_cores = _device_defaults()
    if tn is None:
        tn = tn_default
    if vmem_limit_bytes is None:
        vmem_limit_bytes = vmem_default
    if tv is None:
        tv = V if V <= 512 else next(t for t in (512, 256, 128) if V % t == 0)
    assert V % tv == 0
    nv = V // tv

    # Row tile: never over-pad tiny N, keep a multiple of 8 (sublane), and keep
    # nr >= n_cores so both v7x TensorCores get work on the 'parallel' axis.
    tn = min(tn, _round_up(N, 8))
    if n_cores > 1 and _round_up(N, tn) // tn < n_cores:
        tn = max(8, _round_up(-(-N // n_cores), 8))

    # Pad D (matmul K dim) to a lane multiple; zero columns/rows are exact no-ops.
    d_pad = _round_up(D, 128)
    if d_pad != D:
        x = jnp.pad(x, ((0, 0), (0, d_pad - D)))
        w = jnp.pad(w, ((0, d_pad - D), (0, 0)))

    # Pad rows to a multiple of the row tile; padded rows carry gold=PAD so they
    # contribute exactly zero to both loss terms and are sliced off from pred.
    n_pad = _round_up(N, tn)
    if n_pad != N:
        x = jnp.pad(x, ((0, n_pad - N), (0, 0)))
        gold = jnp.pad(gold, (0, n_pad - N), constant_values=PAD)
    nr = n_pad // tn

    gold2 = gold.reshape(n_pad, 1).astype(jnp.int32)
    x_c = x.astype(compute_dtype)
    w_c = w.astype(compute_dtype)
    b2 = b.reshape(1, V).astype(jnp.float32)

    kernel = functools.partial(_loss_kernel, nv=nv, tv=tv, v_total=V,
                               need_pred=need_pred)

    in_specs = [
        pl.BlockSpec((tn, 1), lambda i, j: (i, 0)),                   # gold
        pl.BlockSpec((tn, d_pad), lambda i, j: (i, 0)),               # x tile (resident)
        pl.BlockSpec((d_pad, tv), lambda i, j: (0, j % nv)),          # W tile (both phases)
        pl.BlockSpec((1, tv), lambda i, j: (0, j % nv)),              # bias tile
    ]
    scratch_shapes = [
        pltpu.VMEM((tn, 1), jnp.float32),   # running max
        pltpu.VMEM((tn, 1), jnp.float32),   # running sum-exp
        pltpu.VMEM((tn, 1), jnp.float32),   # gold logit
        pltpu.VMEM((tn, 1), jnp.float32),   # sum of logits
    ]
    stats_spec = pl.BlockSpec((1, 8, 128), lambda i, j: (i, 0, 0))
    stats_shape = jax.ShapeDtypeStruct((nr, 8, 128), jnp.float32)

    if need_pred:
        grid = (nr, 2 * nv)
        out_shape = (jax.ShapeDtypeStruct((n_pad, V), pred_dtype), stats_shape)
        out_specs = [
            # phase 0: parked on block (i, 0); phase 1: walks the V tiles.
            pl.BlockSpec((tn, tv), lambda i, j: (i, jnp.maximum(j - nv, 0))),
            stats_spec,
        ]
    else:
        grid = (nr, nv)
        out_shape = stats_shape
        out_specs = stats_spec

    outs = pl.pallas_call(
        kernel,
        out_shape=out_shape,
        grid_spec=pltpu.PrefetchScalarGridSpec(
            num_scalar_prefetch=0,
            grid=grid,
            in_specs=in_specs,
            out_specs=out_specs,
            scratch_shapes=scratch_shapes,
        ),
        compiler_params=pltpu.CompilerParams(
            dimension_semantics=("parallel", "arbitrary"),
            vmem_limit_bytes=vmem_limit_bytes),
    )(gold2, x_c, w_c, b2)

    if need_pred:
        pred, stats = outs
        pred = pred[:N]
    else:
        pred, stats = None, outs

    nll_sum = jnp.sum(stats[:, 0, 0])
    smooth_sum = jnp.sum(stats[:, 0, 1])
    return pred, nll_sum, smooth_sum


def main_model_forward(params, src, tgt, compute_dtype=jnp.bfloat16,
                       need_pred=True, pred_dtype=jnp.float32):
    """Mirrors MainModel.forward(src, tgt) with opt.smoothing=True."""
    tgt_tokens = tgt[0]
    gold = tgt_tokens[:, 1:]                                   # gold = tgt[0][:, 1:]
    B, Tm1 = gold.shape
    D = params["emb"].shape[1]

    # TODO(synk): the external encoder/decoder `self.model` has no in-repo
    # definition; it is replaced by a deterministic synthetic head (shared
    # embedding + mean-pooled src context), with the vocab projection fused
    # into the Pallas kernel.
    src_ctx = jnp.mean(params["emb"][src], axis=1, keepdims=True)   # [B, 1, D]
    tgt_in = params["emb"][tgt_tokens[:, :-1]]                      # [B, Tm1, D]
    x = (tgt_in + src_ctx).reshape(B * Tm1, D).astype(jnp.float32)

    pred, nll_sum, smooth_sum = fused_logsoftmax_nll(
        x, params["w"], params["b"], gold.reshape(-1),
        need_pred=need_pred, pred_dtype=pred_dtype,
        compute_dtype=compute_dtype)

    loss_nll = nll_sum                        # NLLLoss(ignore_index=PAD, reduction='sum')
    smooth = -smooth_sum                      # -((gold != PAD) * mean(pred, -1)).sum()
    loss = (1.0 - SMOOTH_EPS) * loss_nll + SMOOTH_EPS * smooth
    return loss, pred


def _reference(params, src, tgt, compute_dtype=jnp.bfloat16):
    tgt_tokens = tgt[0]
    gold = tgt_tokens[:, 1:].reshape(-1)
    B, Tm1 = tgt_tokens[:, 1:].shape
    src_ctx = jnp.mean(params["emb"][src], axis=1, keepdims=True)
    x = (params["emb"][tgt_tokens[:, :-1]] + src_ctx).reshape(B * Tm1, -1)
    logits = jnp.dot(x.astype(compute_dtype), params["w"].astype(compute_dtype),
                     preferred_element_type=jnp.float32) + params["b"]
    logp = jax.nn.log_softmax(logits, axis=1)
    non_pad = (gold != PAD).astype(jnp.float32)
    nll = -jnp.sum(jnp.take_along_axis(logp, gold[:, None], axis=1)[:, 0] * non_pad)
    smooth = -jnp.sum(non_pad * jnp.mean(logp, axis=-1))
    return (1.0 - SMOOTH_EPS) * nll + SMOOTH_EPS * smooth, logp


if __name__ == "__main__":
    B, T_SRC, T_TGT, D, V = 2, 8, 9, 32, 128
    key = jax.random.PRNGKey(0)
    k_emb, k_w, k_src, k_tgt = jax.random.split(key, 4)

    params = {
        "emb": jax.random.normal(k_emb, (V, D), jnp.float32) * 0.02,
        "w": jax.random.normal(k_w, (D, V), jnp.float32) * 0.05,
        "b": jnp.zeros((1, V), jnp.float32),
    }

    src = jax.random.randint(k_src, (B, T_SRC), 1, V, dtype=jnp.int32)
    tgt_tokens = jax.random.randint(k_tgt, (B, T_TGT), 1, V, dtype=jnp.int32)
    tgt_tokens = tgt_tokens.at[:, -2:].set(PAD)   # some PAD positions in gold
    tgt = (tgt_tokens,)

    # Full path (loss + log-probs), matches MainModel.forward return signature.
    loss, pred = jax.jit(main_model_forward)(params, src, tgt)
    jax.block_until_ready((loss, pred))

    # Loss-only training path (no [N, V] writeback, single matmul pass).
    loss_only, _ = jax.jit(
        functools.partial(main_model_forward, need_pred=False))(params, src, tgt)
    jax.block_until_ready(loss_only)

    ref_loss, ref_pred = _reference(params, src, tgt)
    assert pred.shape == ref_pred.shape, "pred shape mismatch"
    assert jnp.allclose(pred, ref_pred, atol=5e-4, rtol=1e-4), "pred mismatch"
    assert jnp.allclose(loss, ref_loss, atol=5e-3, rtol=1e-4), "loss mismatch"
    assert jnp.allclose(loss_only, loss, atol=1e-5, rtol=1e-5), "loss-only mismatch"

    print("KERNEL_OK")
</pallas_src>

<mosaic_0001>
module attributes {stable_mosaic.version = 11 : i64} {
  func.func @_loss_kernel(%arg0: i32, %arg1: i32, %arg2: memref<16x1xi32, #tpu.memory_space<vmem>>, %arg3: memref<16x128xbf16, #tpu.memory_space<vmem>>, %arg4: memref<128x128xbf16, #tpu.memory_space<vmem>>, %arg5: memref<1x128xf32, #tpu.memory_space<vmem>>, %arg6: memref<16x128xf32, #tpu.memory_space<vmem>>, %arg7: memref<1x8x128xf32, #tpu.memory_space<vmem>>, %arg8: memref<16x1xf32, #tpu.memory_space<vmem>>, %arg9: memref<16x1xf32, #tpu.memory_space<vmem>>, %arg10: memref<16x1xf32, #tpu.memory_space<vmem>>, %arg11: memref<16x1xf32, #tpu.memory_space<vmem>>) attributes {dimension_semantics = [#tpu.dimension_semantics<parallel>, #tpu.dimension_semantics<arbitrary>], iteration_bounds = array<i64: 1, 2>, scalar_prefetch = 0 : i64, scratch_operands = 4 : i64, tpu.core_type = #tpu.core_type<tc>, window_params = [{transform_indices = @transform_0, window_bounds = array<i64: 16, 1>}, {transform_indices = @transform_1, window_bounds = array<i64: 16, 128>}, {transform_indices = @transform_2, window_bounds = array<i64: 128, 128>}, {transform_indices = @transform_3, window_bounds = array<i64: 1, 128>}, {transform_indices = @transform_4, window_bounds = array<i64: 16, 128>}, {transform_indices = @transform_5, window_bounds = array<i64: 1, 8, 128>}]} {
    %c0_i32 = arith.constant 0 : i32
    %0 = arith.cmpi eq, %arg1, %c0_i32 : i32
    %1 = arith.extui %0 : i1 to i32
    %c0_i32_0 = arith.constant 0 : i32
    %2 = arith.cmpi ne, %1, %c0_i32_0 : i32
    scf.if %2 {
      %cst = arith.constant -1.000000e+30 : f32
      %12 = vector.broadcast %cst : f32 to vector<16x1xf32>
      %c0 = arith.constant 0 : index
      %c0_6 = arith.constant 0 : index
      %13 = vector.load %arg8[%c0, %c0_6] : memref<16x1xf32, #tpu.memory_space<vmem>>, vector<16x1xf32>
      tpu.vector_store %arg8[%c0, %c0_6], %12 {strides = array<i32>} : memref<16x1xf32, #tpu.memory_space<vmem>>, vector<16x1xf32>,
      %cst_7 = arith.constant 0.000000e+00 : f32
      %14 = vector.broadcast %cst_7 : f32 to vector<16x1xf32>
      %c0_8 = arith.constant 0 : index
      %c0_9 = arith.constant 0 : index
      %15 = vector.load %arg9[%c0_8, %c0_9] : memref<16x1xf32, #tpu.memory_space<vmem>>, vector<16x1xf32>
      tpu.vector_store %arg9[%c0_8, %c0_9], %14 {strides = array<i32>} : memref<16x1xf32, #tpu.memory_space<vmem>>, vector<16x1xf32>,
      %cst_10 = arith.constant 0.000000e+00 : f32
      %16 = vector.broadcast %cst_10 : f32 to vector<16x1xf32>
      %c0_11 = arith.constant 0 : index
      %c0_12 = arith.constant 0 : index
      %17 = vector.load %arg10[%c0_11, %c0_12] : memref<16x1xf32, #tpu.memory_space<vmem>>, vector<16x1xf32>
      tpu.vector_store %arg10[%c0_11, %c0_12], %16 {strides = array<i32>} : memref<16x1xf32, #tpu.memory_space<vmem>>, vector<16x1xf32>,
      %cst_13 = arith.constant 0.000000e+00 : f32
      %18 = vector.broadcast %cst_13 : f32 to vector<16x1xf32>
      %c0_14 = arith.constant 0 : index
      %c0_15 = arith.constant 0 : index
      %19 = vector.load %arg11[%c0_14, %c0_15] : memref<16x1xf32, #tpu.memory_space<vmem>>, vector<16x1xf32>
      tpu.vector_store %arg11[%c0_14, %c0_15], %18 {strides = array<i32>} : memref<16x1xf32, #tpu.memory_space<vmem>>, vector<16x1xf32>,
    } else {
    }
    %c1_i32 = arith.constant 1 : i32
    %3 = arith.cmpi slt, %arg1, %c1_i32 : i32
    %4 = arith.extui %3 : i1 to i32
    %c0_i32_1 = arith.constant 0 : i32
    %5 = arith.cmpi ne, %4, %c0_i32_1 : i32
    scf.if %5 {
      %c0 = arith.constant 0 : index
      %c0_6 = arith.constant 0 : index
      %12 = vector.load %arg3[%c0, %c0_6] : memref<16x128xbf16, #tpu.memory_space<vmem>>, vector<16x128xbf16>
      %c0_7 = arith.constant 0 : index
      %c0_8 = arith.constant 0 : index
      %13 = vector.load %arg4[%c0_7, %c0_8] : memref<128x128xbf16, #tpu.memory_space<vmem>>, vector<128x128xbf16>
      %cst = arith.constant dense<0.000000e+00> : vector<16x128xf32>
      %14 = tpu.matmul %12, %13, %cst {dimension_numbers = #tpu.dot_dimension_numbers<[1], [0], [0], [1], [0, 0, 1, 1], [], []>} : vector<16x128xbf16>, vector<128x128xbf16>, vector<16x128xf32> -> vector<16x128xf32>
      %c0_9 = arith.constant 0 : index
      %c0_10 = arith.constant 0 : index
      %15 = vector.load %arg5[%c0_9, %c0_10] : memref<1x128xf32, #tpu.memory_space<vmem>>, vector<1x128xf32>
      %16 = vector.broadcast %15 : vector<1x128xf32> to vector<16x128xf32>
      %17 = arith.addf %14, %16 : vector<16x128xf32>
      %c0_11 = arith.constant 0 : index
      %c0_12 = arith.constant 0 : index
      %18 = vector.load %arg2[%c0_11, %c0_12] : memref<16x1xi32, #tpu.memory_space<vmem>>, vector<16x1xi32>
      %c128_i32 = arith.constant 128 : i32
      %19 = arith.muli %arg1, %c128_i32 : i32
      %20 = tpu.iota {dimensions = array<i32: 1>} : vector<16x128xi32>
      %21 = vector.broadcast %19 : i32 to vector<16x128xi32>
      %22 = arith.addi %21, %20 : vector<16x128xi32>
      %c0_13 = arith.constant 0 : index
      %c0_14 = arith.constant 0 : index
      %23 = vector.load %arg8[%c0_13, %c0_14] : memref<16x1xf32, #tpu.memory_space<vmem>>, vector<16x1xf32>
      %cst_15 = arith.constant dense<0xFF800000> : vector<16xf32>
      %24 = vector.multi_reduction <maximumf>, %17, %cst_15 [1] : vector<16x128xf32> to vector<16xf32>
      %25 = vector.shape_cast %24 : vector<16xf32> to vector<16x1xf32>
      %26 = arith.maximumf %23, %25 : vector<16x1xf32>
      %c0_16 = arith.constant 0 : index
      %c0_17 = arith.constant 0 : index
      %27 = vector.load %arg9[%c0_16, %c0_17] : memref<16x1xf32, #tpu.memory_space<vmem>>, vector<16x1xf32>
      %28 = arith.subf %23, %26 : vector<16x1xf32>
      %29 = math.exp %28 : vector<16x1xf32>
      %30 = arith.mulf %27, %29 : vector<16x1xf32>
      %31 = vector.broadcast %26 : vector<16x1xf32> to vector<16x128xf32>
      %32 = arith.subf %17, %31 : vector<16x128xf32>
      %33 = math.exp %32 : vector<16x128xf32>
      %cst_18 = arith.constant dense<0.000000e+00> : vector<16xf32>
      %34 = vector.multi_reduction <add>, %33, %cst_18 [1] : vector<16x128xf32> to vector<16xf32>
      %35 = vector.shape_cast %34 : vector<16xf32> to vector<16x1xf32>
      %36 = arith.addf %30, %35 : vector<16x1xf32>
      %c0_19 = arith.constant 0 : index
      %c0_20 = arith.constant 0 : index
      %37 = vector.load %arg9[%c0_19, %c0_20] : memref<16x1xf32, #tpu.memory_space<vmem>>, vector<16x1xf32>
      tpu.vector_store %arg9[%c0_19, %c0_20], %36 {strides = array<i32>} : memref<16x1xf32, #tpu.memory_space<vmem>>, vector<16x1xf32>,
      %c0_21 = arith.constant 0 : index
      %c0_22 = arith.constant 0 : index
      %38 = vector.load %arg8[%c0_21, %c0_22] : memref<16x1xf32, #tpu.memory_space<vmem>>, vector<16x1xf32>
      tpu.vector_store %arg8[%c0_21, %c0_22], %26 {strides = array<i32>} : memref<16x1xf32, #tpu.memory_space<vmem>>, vector<16x1xf32>,
      %c0_23 = arith.constant 0 : index
      %c0_24 = arith.constant 0 : index
      %39 = vector.load %arg11[%c0_23, %c0_24] : memref<16x1xf32, #tpu.memory_space<vmem>>, vector<16x1xf32>
      %cst_25 = arith.constant dense<0.000000e+00> : vector<16xf32>
      %40 = vector.multi_reduction <add>, %17, %cst_25 [1] : vector<16x128xf32> to vector<16xf32>
      %41 = vector.shape_cast %40 : vector<16xf32> to vector<16x1xf32>
      %42 = arith.addf %39, %41 : vector<16x1xf32>
      %c0_26 = arith.constant 0 : index
      %c0_27 = arith.constant 0 : index
      %43 = vector.load %arg11[%c0_26, %c0_27] : memref<16x1xf32, #tpu.memory_space<vmem>>, vector<16x1xf32>
      tpu.vector_store %arg11[%c0_26, %c0_27], %42 {strides = array<i32>} : memref<16x1xf32, #tpu.memory_space<vmem>>, vector<16x1xf32>,
      %c0_28 = arith.constant 0 : index
      %c0_29 = arith.constant 0 : index
      %44 = vector.load %arg10[%c0_28, %c0_29] : memref<16x1xf32, #tpu.memory_space<vmem>>, vector<16x1xf32>
      %45 = vector.broadcast %18 : vector<16x1xi32> to vector<16x128xi32>
      %46 = arith.cmpi eq, %22, %45 : vector<16x128xi32>
      %cst_30 = arith.constant 0.000000e+00 : f32
      %47 = vector.broadcast %cst_30 : f32 to vector<16x128xf32>
      %48 = arith.select %46, %17, %47 : vector<16x128xi1>, vector<16x128xf32>
      %cst_31 = arith.constant dense<0.000000e+00> : vector<16xf32>
      %49 = vector.multi_reduction <add>, %48, %cst_31 [1] : vector<16x128xf32> to vector<16xf32>
      %50 = vector.shape_cast %49 : vector<16xf32> to vector<16x1xf32>
      %51 = arith.addf %44, %50 : vector<16x1xf32>
      %c0_32 = arith.constant 0 : index
      %c0_33 = arith.constant 0 : index
      %52 = vector.load %arg10[%c0_32, %c0_33] : memref<16x1xf32, #tpu.memory_space<vmem>>, vector<16x1xf32>
      tpu.vector_store %arg10[%c0_32, %c0_33], %51 {strides = array<i32>} : memref<16x1xf32, #tpu.memory_space<vmem>>, vector<16x1xf32>,
    } else {
    }
    %c0_i32_2 = arith.constant 0 : i32
    %6 = arith.cmpi eq, %arg1, %c0_i32_2 : i32
    %7 = arith.extui %6 : i1 to i32
    %c0_i32_3 = arith.constant 0 : i32
    %8 = arith.cmpi ne, %7, %c0_i32_3 : i32
    scf.if %8 {
      %c0 = arith.constant 0 : index
      %c0_6 = arith.constant 0 : index
      %12 = vector.load %arg8[%c0, %c0_6] : memref<16x1xf32, #tpu.memory_space<vmem>>, vector<16x1xf32>
      %c0_7 = arith.constant 0 : index
      %c0_8 = arith.constant 0 : index
      %13 = vector.load %arg9[%c0_7, %c0_8] : memref<16x1xf32, #tpu.memory_space<vmem>>, vector<16x1xf32>
      %14 = math.log %13 : vector<16x1xf32>
      %15 = arith.addf %12, %14 : vector<16x1xf32>
      %c0_9 = arith.constant 0 : index
      %c0_10 = arith.constant 0 : index
      %16 = vector.load %arg2[%c0_9, %c0_10] : memref<16x1xi32, #tpu.memory_space<vmem>>, vector<16x1xi32>
      %c0_i32_11 = arith.constant 0 : i32
      %17 = vector.broadcast %c0_i32_11 : i32 to vector<16x1xi32>
      %18 = arith.cmpi ne, %16, %17 : vector<16x1xi32>
      %19 = arith.extui %18 : vector<16x1xi1> to vector<16x1xi32>
      %20 = arith.sitofp %19 : vector<16x1xi32> to vector<16x1xf32>
      %c0_12 = arith.constant 0 : index
      %c0_13 = arith.constant 0 : index
      %21 = vector.load %arg10[%c0_12, %c0_13] : memref<16x1xf32, #tpu.memory_space<vmem>>, vector<16x1xf32>
      %22 = arith.subf %21, %15 : vector<16x1xf32>
      %cst = arith.constant 0.000000e+00 : f32
      %23 = vector.broadcast %cst : f32 to vector<16x1xf32>
      %24 = arith.subf %23, %22 : vector<16x1xf32>
      %25 = arith.mulf %24, %20 : vector<16x1xf32>
      %26 = vector.shape_cast %25 : vector<16x1xf32> to vector<1x16x1xf32>
      %cst_14 = arith.constant dense<0.000000e+00> : vector<1xf32>
      %27 = vector.multi_reduction <add>, %26, %cst_14 [1, 2] : vector<1x16x1xf32> to vector<1xf32>
      %28 = vector.shape_cast %27 : vector<1xf32> to vector<1x1x1xf32>
      %29 = vector.extract %28[0, 0, 0] : f32 from vector<1x1x1xf32>
      %c0_15 = arith.constant 0 : index
      %c0_16 = arith.constant 0 : index
      %30 = vector.load %arg11[%c0_15, %c0_16] : memref<16x1xf32, #tpu.memory_space<vmem>>, vector<16x1xf32>
      %cst_17 = arith.constant 7.812500e-03 : f32
      %31 = vector.broadcast %cst_17 : f32 to vector<16x1xf32>
      %32 = arith.mulf %30, %31 : vector<16x1xf32>
      %33 = arith.subf %32, %15 : vector<16x1xf32>
      %34 = arith.mulf %33, %20 : vector<16x1xf32>
      %35 = vector.shape_cast %34 : vector<16x1xf32> to vector<1x16x1xf32>
      %cst_18 = arith.constant dense<0.000000e+00> : vector<1xf32>
      %36 = vector.multi_reduction <add>, %35, %cst_18 [1, 2] : vector<1x16x1xf32> to vector<1xf32>
      %37 = vector.shape_cast %36 : vector<1xf32> to vector<1x1x1xf32>
      %38 = vector.extract %37[0, 0, 0] : f32 from vector<1x1x1xf32>
      %39 = tpu.iota {dimensions = array<i32: 2>} : vector<1x8x128xi32>
      %40 = tpu.iota {dimensions = array<i32: 1>} : vector<1x8x128xi32>
      %c0_i32_19 = arith.constant 0 : i32
      %41 = vector.broadcast %c0_i32_19 : i32 to vector<1x8x128xi32>
      %42 = arith.cmpi eq, %39, %41 : vector<1x8x128xi32>
      %c1_i32_20 = arith.constant 1 : i32
      %43 = vector.broadcast %c1_i32_20 : i32 to vector<1x8x128xi32>
      %44 = arith.cmpi eq, %39, %43 : vector<1x8x128xi32>
      %cst_21 = arith.constant 0.000000e+00 : f32
      %45 = vector.broadcast %38 : f32 to vector<1x8x128xf32>
      %46 = vector.broadcast %cst_21 : f32 to vector<1x8x128xf32>
      %47 = arith.select %44, %45, %46 : vector<1x8x128xi1>, vector<1x8x128xf32>
      %48 = vector.broadcast %29 : f32 to vector<1x8x128xf32>
      %49 = arith.select %42, %48, %47 : vector<1x8x128xi1>, vector<1x8x128xf32>
      %c0_i32_22 = arith.constant 0 : i32
      %50 = vector.broadcast %c0_i32_22 : i32 to vector<1x8x128xi32>
      %51 = arith.cmpi eq, %40, %50 : vector<1x8x128xi32>
      %cst_23 = arith.constant 0.000000e+00 : f32
      %52 = vector.broadcast %cst_23 : f32 to vector<1x8x128xf32>
      %53 = arith.select %51, %49, %52 : vector<1x8x128xi1>, vector<1x8x128xf32>
      %c0_24 = arith.constant 0 : index
      %c0_25 = arith.constant 0 : index
      %c0_26 = arith.constant 0 : index
      %54 = vector.load %arg7[%c0_24, %c0_25, %c0_26] : memref<1x8x128xf32, #tpu.memory_space<vmem>>, vector<1x8x128xf32>
      tpu.vector_store %arg7[%c0_24, %c0_25, %c0_26], %53 {strides = array<i32>} : memref<1x8x128xf32, #tpu.memory_space<vmem>>, vector<1x8x128xf32>,
    } else {
    }
    %c1_i32_4 = arith.constant 1 : i32
    %9 = arith.cmpi sge, %arg1, %c1_i32_4 : i32
    %10 = arith.extui %9 : i1 to i32
    %c0_i32_5 = arith.constant 0 : i32
    %11 = arith.cmpi ne, %10, %c0_i32_5 : i32
    scf.if %11 {
      %c0 = arith.constant 0 : index
      %c0_6 = arith.constant 0 : index
      %12 = vector.load %arg3[%c0, %c0_6] : memref<16x128xbf16, #tpu.memory_space<vmem>>, vector<16x128xbf16>
      %c0_7 = arith.constant 0 : index
      %c0_8 = arith.constant 0 : index
      %13 = vector.load %arg4[%c0_7, %c0_8] : memref<128x128xbf16, #tpu.memory_space<vmem>>, vector<128x128xbf16>
      %cst = arith.constant dense<0.000000e+00> : vector<16x128xf32>
      %14 = tpu.matmul %12, %13, %cst {dimension_numbers = #tpu.dot_dimension_numbers<[1], [0], [0], [1], [0, 0, 1, 1], [], []>} : vector<16x128xbf16>, vector<128x128xbf16>, vector<16x128xf32> -> vector<16x128xf32>
      %c0_9 = arith.constant 0 : index
      %c0_10 = arith.constant 0 : index
      %15 = vector.load %arg5[%c0_9, %c0_10] : memref<1x128xf32, #tpu.memory_space<vmem>>, vector<1x128xf32>
      %16 = vector.broadcast %15 : vector<1x128xf32> to vector<16x128xf32>
      %17 = arith.addf %14, %16 : vector<16x128xf32>
      %c0_11 = arith.constant 0 : index
      %c0_12 = arith.constant 0 : index
      %18 = vector.load %arg8[%c0_11, %c0_12] : memref<16x1xf32, #tpu.memory_space<vmem>>, vector<16x1xf32>
      %c0_13 = arith.constant 0 : index
      %c0_14 = arith.constant 0 : index
      %19 = vector.load %arg9[%c0_13, %c0_14] : memref<16x1xf32, #tpu.memory_space<vmem>>, vector<16x1xf32>
      %20 = math.log %19 : vector<16x1xf32>
      %21 = arith.addf %18, %20 : vector<16x1xf32>
      %22 = vector.broadcast %21 : vector<16x1xf32> to vector<16x128xf32>
      %23 = arith.subf %17, %22 : vector<16x128xf32>
      %c0_15 = arith.constant 0 : index
      %c0_16 = arith.constant 0 : index
      %24 = vector.load %arg6[%c0_15, %c0_16] : memref<16x128xf32, #tpu.memory_space<vmem>>, vector<16x128xf32>
      tpu.vector_store %arg6[%c0_15, %c0_16], %23 {strides = array<i32>} : memref<16x128xf32, #tpu.memory_space<vmem>>, vector<16x128xf32>,
    } else {
    }
    return
  }
  func.func @transform_0(%arg0: i32, %arg1: i32) -> (i32, i32) {
    %c0_i32 = arith.constant 0 : i32
    %c0_i32_0 = arith.constant 0 : i32
    return %arg0, %c0_i32 : i32, i32
  }
  func.func @transform_1(%arg0: i32, %arg1: i32) -> (i32, i32) {
    %c0_i32 = arith.constant 0 : i32
    %c0_i32_0 = arith.constant 0 : i32
    return %arg0, %c0_i32 : i32, i32
  }
  func.func @transform_2(%arg0: i32, %arg1: i32) -> (i32, i32) {
    %c1_i32 = arith.constant 1 : i32
    %c0_i32 = arith.constant 0 : i32
    %0 = arith.cmpi eq, %c1_i32, %c0_i32 : i32
    %c1_i32_0 = arith.constant 1 : i32
    %1 = arith.select %0, %c1_i32_0, %c1_i32 : i32
    %2 = arith.remsi %arg1, %1 : i32
    %c0_i32_1 = arith.constant 0 : i32
    %3 = arith.cmpi ne, %2, %c0_i32_1 : i32
    %c0_i32_2 = arith.constant 0 : i32
    %4 = arith.cmpi slt, %2, %c0_i32_2 : i32
    %c0_i32_3 = arith.constant 0 : i32
    %5 = arith.cmpi slt, %1, %c0_i32_3 : i32
    %6 = arith.xori %4, %5 : i1
    %7 = arith.andi %6, %3 : i1
    %8 = arith.addi %2, %1 : i32
    %9 = arith.select %7, %8, %2 : i32
    %c0_i32_4 = arith.constant 0 : i32
    %c0_i32_5 = arith.constant 0 : i32
    return %c0_i32_4, %9 : i32, i32
  }
  func.func @transform_3(%arg0: i32, %arg1: i32) -> (i32, i32) {
    %c1_i32 = arith.constant 1 : i32
    %c0_i32 = arith.constant 0 : i32
    %0 = arith.cmpi eq, %c1_i32, %c0_i32 : i32
    %c1_i32_0 = arith.constant 1 : i32
    %1 = arith.select %0, %c1_i32_0, %c1_i32 : i32
    %2 = arith.remsi %arg1, %1 : i32
    %c0_i32_1 = arith.constant 0 : i32
    %3 = arith.cmpi ne, %2, %c0_i32_1 : i32
    %c0_i32_2 = arith.constant 0 : i32
    %4 = arith.cmpi slt, %2, %c0_i32_2 : i32
    %c0_i32_3 = arith.constant 0 : i32
    %5 = arith.cmpi slt, %1, %c0_i32_3 : i32
    %6 = arith.xori %4, %5 : i1
    %7 = arith.andi %6, %3 : i1
    %8 = arith.addi %2, %1 : i32
    %9 = arith.select %7, %8, %2 : i32
    %c0_i32_4 = arith.constant 0 : i32
    %c0_i32_5 = arith.constant 0 : i32
    return %c0_i32_4, %9 : i32, i32
  }
  func.func @transform_4(%arg0: i32, %arg1: i32) -> (i32, i32) {
    %c1_i32 = arith.constant 1 : i32
    %0 = arith.subi %arg1, %c1_i32 : i32
    %c0_i32 = arith.constant 0 : i32
    %1 = arith.maxsi %0, %c0_i32 : i32
    %c0_i32_0 = arith.constant 0 : i32
    return %arg0, %1 : i32, i32
  }
  func.func @transform_5(%arg0: i32, %arg1: i32) -> (i32, i32, i32) {
    %c0_i32 = arith.constant 0 : i32
    %c0_i32_0 = arith.constant 0 : i32
    %c0_i32_1 = arith.constant 0 : i32
    return %arg0, %c0_i32, %c0_i32_0 : i32, i32, i32
  }
}

</mosaic_0001>

<llo_original>
// kernel: main_model_forward.1
$region0: #{main_model_forward.1}
  #allocation0 [shape = 'u32[]', space=smem, size = 0x4, offset = 0x4, fixed_abs, tag = 'smem constant byte address 0x4 - core index']
  #allocation1 [shape = 'u32[144,128]{1,0:T(1,128)}', space=vmem, size = 0x12000, scoped, tag = 'internal scratch']
  #allocation2 [shape = 'f32[16,1]{1,0:T(8,128)}', space=vmem, size = 0x2000, scoped, tag = 'scratch operand']
  #allocation3 [shape = 'f32[16,1]{1,0:T(8,128)}', space=vmem, size = 0x2000, scoped, tag = 'scratch operand']
  #allocation4 [shape = 'f32[16,1]{1,0:T(8,128)}', space=vmem, size = 0x2000, scoped, tag = 'scratch operand']
  #allocation5 [shape = 'f32[16,1]{1,0:T(8,128)}', space=vmem, size = 0x2000, scoped, tag = 'scratch operand']
  %s0 = inlined_call_operand.vmem [shape: s32[16,1], index: 0, kind: input, shape index: {}]
  %s1 = inlined_call_operand.vmem [shape: bf16[16,128], index: 1, kind: input, shape index: {}]
  %s2 = inlined_call_operand.vmem [shape: bf16[128,128], index: 2, kind: input, shape index: {}]
  %s3 = inlined_call_operand.vmem [shape: f32[1,128], index: 3, kind: input, shape index: {}]
  %s4 = inlined_call_operand.hbm [shape: f32[16,128], index: 4, kind: output, shape index: {0}]
  %s5 = inlined_call_operand.vmem [shape: f32[1,8,128], index: 5, kind: output, shape index: {1}]
  %6 = xla_tuple %s4, %s5
  %s7 = sld [smem:[#allocation0]]
  $region73: #{main_model_forward.1} parent=0
    _
  %s9 = ssub.s32 1, %s7
  %s10 = scalar_select 0, %s9, %s7
  $region1: #{main_model_forward.1} parent=0
    #allocation6 [shape = 'u8[16384]{0}', space=vmem, size = 0x4000, scoped, tag = 'output window, operand 0']
    #allocation7 [shape = 's32[2]{0}', space=sflag, size = 0x8, scoped, tag = 'scoped memory for main_model_forward.1']
    %11 = vsyncpa [#allocation7], 0
    %s12 = scalar_lea.sflag [#allocation7], 1
    %13 = vsyncpa %s12, 0
    loop: start=0, step=1, limit=4
    $region2: #{main_model_forward.1} parent=1 // loop_pre_header
      _
    $region3: #{main_model_forward.1} parent=1 // loop_header
      %s15 = sphi 0, %s19
      %p16 = scmp.ge.s32.totalorder %s15, 4
      %s22 = sphi 0, %s34
      %s23 = sphi 0, %s30
      %s24 = sphi 0, %s22
      %s25 = sphi 0, %s23
      %s26 = sphi 0, %s24
      %s27 = sphi 0, %s25
      %s37 = sphi 0, %s39
      %s40 = sphi 0, %s37
      %s41 = sphi 0, %s40
      %s57 = sphi 0, %s41
      %s63 = sphi 0, %s65
      %s66 = sphi 0, %s63
      %s67 = sphi 0, %s66
      %s83 = sphi 0, %s67
      %s87 = sphi 0, %s87
      %s89 = sphi 0, %s87
      %s90 = sphi 0, %s89
      %s104 = sphi 0, %s90
      %s108 = sphi 0, %s108
      %s110 = sphi 0, %s108
      %s111 = sphi 0, %s110
      %s125 = sphi 0, %s111
      %s139 = sphi 0, %s141
      %s142 = sphi 0, %s139
      %s143 = sphi 0, %s142
      %s159 = sphi 0, %s143
      %s165 = sphi 0, %s167
      %s168 = sphi 0, %s165
      %s169 = sphi 0, %s168
      %s185 = sphi 0, %s169
    $region4: #{main_model_forward.1} parent=1 // loop_header_branch
      %18 = sbr.rel (%p16) target = $region8
    $region5: #{main_model_forward.1} parent=1 // loop_body
      %s20 = ssub.s32 %s15, 1
      %s21 = ssub.s32 %s15, 2
      %s28 = sadd.s32 1, %s23
      %p29 = scmp.ge.s32.totalorder %s28, 2
      %s30 = scalar_select %p29, 0, %s28
      %s31 = sadd.s32 1, %s22
      %s32 = scalar_select %p29, %s31, %s22
      %p33 = scmp.ge.s32.totalorder %s32, 1
      %s34 = scalar_select %p33, 0, %s32
      %s35 = ssub.s32 %s22, %s34
      %p36 = scmp.eq.s32.totalorder %s35, 0
      %s38 = sadd.s32 %s37, 1
      %s39 = scalar_select %p36, %s37, %s38
      %p42 = pneg %p36
      %p43 = scmp.eq.s32.totalorder %s15, 1
      %p44 = por %p42, %p43
      %p45 = scmp.ne.s32.totalorder %s37, %s40
      %p46 = scmp.eq.s32.totalorder %s15, 0
      %p47 = por %p45, %p46
      %p48 = scmp.ne.s32.totalorder %s37, %s40
      %p49 = scmp.eq.s32.totalorder %s20, 1
      %p50 = por %p48, %p49
      %p51 = scmp.ne.s32.totalorder %s40, %s41
      %p52 = scmp.eq.s32.totalorder %s20, 0
      %p53 = por %p51, %p52
      %p54 = scmp.ne.s32.totalorder %s40, %s41
      %p55 = scmp.eq.s32.totalorder %s21, 1
      %p56 = por %p54, %p55
      %p58 = scmp.ne.s32.totalorder %s41, %s57
      %p59 = scmp.eq.s32.totalorder %s21, 0
      %p60 = por %p58, %p59
      %s61 = ssub.s32 %s22, %s34
      %p62 = scmp.eq.s32.totalorder %s61, 0
      %s64 = sadd.s32 %s63, 1
      %s65 = scalar_select %p62, %s63, %s64
      %p68 = pneg %p62
      %p69 = scmp.eq.s32.totalorder %s15, 1
      %p70 = por %p68, %p69
      %p71 = scmp.ne.s32.totalorder %s63, %s66
      %p72 = scmp.eq.s32.totalorder %s15, 0
      %p73 = por %p71, %p72
      %p74 = scmp.ne.s32.totalorder %s63, %s66
      %p75 = scmp.eq.s32.totalorder %s20, 1
      %p76 = por %p74, %p75
      %p77 = scmp.ne.s32.totalorder %s66, %s67
      %p78 = scmp.eq.s32.totalorder %s20, 0
      %p79 = por %p77, %p78
      %p80 = scmp.ne.s32.totalorder %s66, %s67
      %p81 = scmp.eq.s32.totalorder %s21, 1
      %p82 = por %p80, %p81
      %p84 = scmp.ne.s32.totalorder %s67, %s83
      %p85 = scmp.eq.s32.totalorder %s21, 0
      %p86 = por %p84, %p85
      %s88 = sadd.s32 %s87, 1
      %p91 = scmp.eq.s32.totalorder %s15, 1
      %p92 = scmp.ne.s32.totalorder %s87, %s89
      %p93 = scmp.eq.s32.totalorder %s15, 0
      %p94 = por %p92, %p93
      %p95 = scmp.ne.s32.totalorder %s87, %s89
      %p96 = scmp.eq.s32.totalorder %s20, 1
      %p97 = por %p95, %p96
      %p98 = scmp.ne.s32.totalorder %s89, %s90
      %p99 = scmp.eq.s32.totalorder %s20, 0
      %p100 = por %p98, %p99
      %p101 = scmp.ne.s32.totalorder %s89, %s90
      %p102 = scmp.eq.s32.totalorder %s21, 1
      %p103 = por %p101, %p102
      %p105 = scmp.ne.s32.totalorder %s90, %s104
      %p106 = scmp.eq.s32.totalorder %s21, 0
      %p107 = por %p105, %p106
      %s109 = sadd.s32 %s108, 1
      %p112 = scmp.eq.s32.totalorder %s15, 1
      %p113 = scmp.ne.s32.totalorder %s108, %s110
      %p114 = scmp.eq.s32.totalorder %s15, 0
      %p115 = por %p113, %p114
      %p116 = scmp.ne.s32.totalorder %s108, %s110
      %p117 = scmp.eq.s32.totalorder %s20, 1
      %p118 = por %p116, %p117
      %p119 = scmp.ne.s32.totalorder %s110, %s111
      %p120 = scmp.eq.s32.totalorder %s20, 0
      %p121 = por %p119, %p120
      %p122 = scmp.ne.s32.totalorder %s110, %s111
      %p123 = scmp.eq.s32.totalorder %s21, 1
      %p124 = por %p122, %p123
      %p126 = scmp.ne.s32.totalorder %s111, %s125
      %p127 = scmp.eq.s32.totalorder %s21, 0
      %p128 = por %p126, %p127
      %s129 = ssub.s32 %s23, 1
      %p130 = scmp.gt.s32.totalorder %s129, 0
      %s131 = scalar_select %p130, %s129, 0
      %s132 = ssub.s32 %s30, 1
      %p133 = scmp.gt.s32.totalorder %s132, 0
      %s134 = scalar_select %p133, %s132, 0
      %s135 = ssub.s32 %s22, %s34
      %s136 = ssub.s32 %s131, %s134
      %s137 = sor.u32 %s135, %s136
      %p138 = scmp.eq.s32.totalorder %s137, 0
      %s140 = sadd.s32 %s139, 1
      %s141 = scalar_select %p138, %s139, %s140
      %p144 = pneg %p138
      %p145 = scmp.eq.s32.totalorder %s15, 1
      %p146 = por %p144, %p145
      %p147 = scmp.ne.s32.totalorder %s139, %s142
      %p148 = scmp.eq.s32.totalorder %s15, 0
      %p149 = por %p147, %p148
      %p150 = scmp.ne.s32.totalorder %s139, %s142
      %p151 = scmp.eq.s32.totalorder %s20, 1
      %p152 = por %p150, %p151
      %p153 = scmp.ne.s32.totalorder %s142, %s143
      %p154 = scmp.eq.s32.totalorder %s20, 0
      %p155 = por %p153, %p154
      %p156 = scmp.ne.s32.totalorder %s142, %s143
      %p157 = scmp.eq.s32.totalorder %s21, 1
      %p158 = por %p156, %p157
      %p160 = scmp.ne.s32.totalorder %s143, %s159
      %p161 = scmp.eq.s32.totalorder %s21, 0
      %p162 = por %p160, %p161
      %s163 = ssub.s32 %s22, %s34
      %p164 = scmp.eq.s32.totalorder %s163, 0
      %s166 = sadd.s32 %s165, 1
      %s167 = scalar_select %p164, %s165, %s166
      %p170 = pneg %p164
      %p171 = scmp.eq.s32.totalorder %s15, 1
      %p172 = por %p170, %p171
      %p173 = scmp.ne.s32.totalorder %s165, %s168
      %p174 = scmp.eq.s32.totalorder %s15, 0
      %p175 = por %p173, %p174
      %p176 = scmp.ne.s32.totalorder %s165, %s168
      %p177 = scmp.eq.s32.totalorder %s20, 1
      %p178 = por %p176, %p177
      %p179 = scmp.ne.s32.totalorder %s168, %s169
      %p180 = scmp.eq.s32.totalorder %s20, 0
      %p181 = por %p179, %p180
      %p182 = scmp.ne.s32.totalorder %s168, %s169
      %p183 = scmp.eq.s32.totalorder %s21, 1
      %p184 = por %p182, %p183
      %p186 = scmp.ne.s32.totalorder %s169, %s185
      %p187 = scmp.eq.s32.totalorder %s21, 0
      %p188 = por %p186, %p187
      %p189 = scmp.le.s32.totalorder 1, %s15
      %p190 = scmp.lt.s32.totalorder %s15, 3
      %p191 = pnand %p189, %p190
      %p192 = pneg %p191
      // Predicated region
      $region9: #{main_model_forward.1} parent=5 // pred_check
        _
      $region10: #{main_model_forward.1} parent=5 // pred_check_branch
        %194 = sbr.rel (%p191) target = $region12
      $region11: #{main_model_forward.1} parent=5 // pred_region
        %s195 = ssub.s32 %s15, 1
        // Predicated region
        $region13: #{main_model_forward.1} parent=11 // pred_check
          %p196 = pneg %p53
        $region14: #{main_model_forward.1} parent=11 // pred_check_branch
          %198 = sbr.rel (%p196) target = $region16
        $region15: #{main_model_forward.1} parent=11 // pred_region
          %s199 = smul.u32 2, %s24
          %p200 = scmp.lt.s32.totalorder %s199, 1
          %s201 = scalar_select %p200, %s199, 1
          %s202 = smul.addr %s201, 8
          %s203 = scalar_lea.vmem %s0, %s202
          %s204 = smul.u32 2, %s24
        $region16: #{main_model_forward.1} parent=11 // pred_fallthru
          _
        // Predicated region
        $region17: #{main_model_forward.1} parent=11 // pred_check
          %p205 = pneg %p79
        $region18: #{main_model_forward.1} parent=11 // pred_check_branch
          %207 = sbr.rel (%p205) target = $region20
        $region19: #{main_model_forward.1} parent=11 // pred_region
          %s208 = smul.u32 2, %s24
          %p209 = scmp.lt.s32.totalorder %s208, 1
          %s210 = scalar_select %p209, %s208, 1
          %s211 = smul.addr %s210, 4
          %s212 = scalar_lea.vmem %s1, %s211
          %s213 = smul.u32 2, %s24
        $region20: #{main_model_forward.1} parent=11 // pred_fallthru
          _
        // Predicated region
        $region21: #{main_model_forward.1} parent=11 // pred_check
          %p214 = pneg %p100
        $region22: #{main_model_forward.1} parent=11 // pred_check_branch
          %216 = sbr.rel (%p214) target = $region24
        $region23: #{main_model_forward.1} parent=11 // pred_region
          _
        $region24: #{main_model_forward.1} parent=11 // pred_fallthru
          _
        // Predicated region
        $region25: #{main_model_forward.1} parent=11 // pred_check
          %p217 = pneg %p121
        $region26: #{main_model_forward.1} parent=11 // pred_check_branch
          %219 = sbr.rel (%p217) target = $region28
        $region27: #{main_model_forward.1} parent=11 // pred_region
          _
        $region28: #{main_model_forward.1} parent=11 // pred_fallthru
          _
      $region12: #{main_model_forward.1} parent=5 // pred_fallthru
        _
      %p220 = scmp.lt.s32.totalorder %s15, 2
      // Predicated region
      $region29: #{main_model_forward.1} parent=5 // pred_check
        %p221 = pneg %p220
      $region30: #{main_model_forward.1} parent=5 // pred_check_branch
        %223 = sbr.rel (%p221) target = $region32
      $region31: #{main_model_forward.1} parent=5 // pred_region
        _
      $region32: #{main_model_forward.1} parent=5 // pred_fallthru
        _
      %p224 = scmp.le.s32.totalorder 1, %s15
      %p225 = scmp.lt.s32.totalorder %s15, 3
      %p226 = pnand %p224, %p225
      %p227 = pneg %p226
      // Predicated region
      $region33: #{main_model_forward.1} parent=5 // pred_check
        _
      $region34: #{main_model_forward.1} parent=5 // pred_check_branch
        %229 = sbr.rel (%p226) target = $region36
      $region35: #{main_model_forward.1} parent=5 // pred_region
        %s230 = ssub.s32 %s15, 1
        %s231 = smul.u32 2, %s24
        %p232 = scmp.lt.s32.totalorder %s231, 1
        %s233 = scalar_select %p232, %s231, 1
        %s234 = smul.addr %s233, 8
        %s235 = scalar_lea.vmem %s0, %s234
        %p236 = pneg %p53
        %p237 = pneg %p50
        %s238 = smul.u32 2, %s24
        %p239 = scmp.lt.s32.totalorder %s238, 1
        %s240 = scalar_select %p239, %s238, 1
        %s241 = smul.addr %s240, 4
        %s242 = scalar_lea.vmem %s1, %s241
        %p243 = pneg %p79
        %p244 = pneg %p76
        %p245 = pneg %p100
        %p246 = pneg %p97
        %p247 = pneg %p121
        %p248 = pneg %p118
        %p249 = pneg %p155
        %p250 = pneg %p152
        %s251 = sand.u32 %s142, 1
        %s252 = scalar_lea.sflag [#allocation7], %s251
        %s253 = sand.u32 %s142, 1
        %s254 = smul.addr %s253, 16
        %s255 = scalar_lea.vmem [#allocation6], %s254
        %p256 = pneg %p181
        %p257 = pneg %p178
        %p258 = scmp.lt.s32.totalorder %s24, 0
        %s259 = scalar_select %p258, %s24, 0
        %s260 = smul.addr %s259, 8
        %s261 = scalar_lea.vmem %s5, %s260
        %s262 = smul.u32 2, %s24
        %p263 = scmp.lt.s32.totalorder %s262, 1
        %s264 = scalar_select %p263, %s262, 1
        %s265 = smul.addr %s264, 8
        %s266 = scalar_lea.vmem %s0, %s265
        %s267 = smul.u32 2, %s24
        %s268 = smul.u32 2, %s24
        %p269 = scmp.lt.s32.totalorder %s268, 1
        %s270 = scalar_select %p269, %s268, 1
        %s271 = smul.addr %s270, 4
        %s272 = scalar_lea.vmem %s1, %s271
        %s273 = smul.u32 2, %s24
        %s274 = ssub.s32 %s25, 1
        %p275 = scmp.gt.s32.totalorder %s274, 0
        %s276 = scalar_select %p275, %s274, 0
        %s277 = smul.u32 2, %s24
        %p278 = scmp.lt.s32.totalorder %s24, 0
        %s279 = scalar_select %p278, %s24, 0
        %s280 = smul.addr %s279, 8
        %s281 = scalar_lea.vmem %s5, %s280
        %p283 = scmp.eq.s32.totalorder %s25, 0
        // Predicated region
        $region37: #{main_model_forward.1} parent=35 // pred_check
          %p284 = pneg %p283
        $region38: #{main_model_forward.1} parent=35 // pred_check_branch
          %286 = sbr.rel (%p284) target = $region40
        $region39: #{main_model_forward.1} parent=35 // pred_region
          %vm287 = vcmask 7168
          %288 = vst.msk [vmem:[#allocation2] sm:$0xff] %vm287, -1e+30
          %289 = vst.msk [vmem:[#allocation2 + $0x8] sm:$0xff] %vm287, -1e+30
          %290 = vst.msk [vmem:[#allocation3] sm:$0xff] %vm287, 0.0
          %291 = vst.msk [vmem:[#allocation3 + $0x8] sm:$0xff] %vm287, 0.0
          %292 = vst.msk [vmem:[#allocation4] sm:$0xff] %vm287, 0.0
          %293 = vst.msk [vmem:[#allocation4 + $0x8] sm:$0xff] %vm287, 0.0
          %294 = vst.msk [vmem:[#allocation5] sm:$0xff] %vm287, 0.0
          %295 = vst.msk [vmem:[#allocation5 + $0x8] sm:$0xff] %vm287, 0.0
        $region40: #{main_model_forward.1} parent=35 // pred_fallthru
          _
        %p296 = scmp.lt.s32.totalorder %s25, 1
        // Predicated region
        $region41: #{main_model_forward.1} parent=35 // pred_check
          %p297 = pneg %p296
        $region42: #{main_model_forward.1} parent=35 // pred_check_branch
          %299 = sbr.rel (%p297) target = $region44
        $region43: #{main_model_forward.1} parent=35 // pred_region
          %v300 = vld [vmem:[%s272] sm:$0xf]
          %v301 = vld [vmem:[%s272 + $0x4] sm:$0xf]
          %v302 = vld [vmem:[%s2] sm:$0xf]
          %v303 = vld [vmem:[%s2 + $0x4] sm:$0xf]
          %v304 = vld [vmem:[%s2 + $0x8] sm:$0xf]
          %v305 = vld [vmem:[%s2 + $0xc] sm:$0xf]
          %v306 = vld [vmem:[%s2 + $0x10] sm:$0xf]
          %v307 = vld [vmem:[%s2 + $0x14] sm:$0xf]
          %v308 = vld [vmem:[%s2 + $0x18] sm:$0xf]
          %v309 = vld [vmem:[%s2 + $0x1c] sm:$0xf]
          %v310 = vld [vmem:[%s2 + $0x20] sm:$0xf]
          %v311 = vld [vmem:[%s2 + $0x24] sm:$0xf]
          %v312 = vld [vmem:[%s2 + $0x28] sm:$0xf]
          %v313 = vld [vmem:[%s2 + $0x2c] sm:$0xf]
          %v314 = vld [vmem:[%s2 + $0x30] sm:$0xf]
          %v315 = vld [vmem:[%s2 + $0x34] sm:$0xf]
          %v316 = vld [vmem:[%s2 + $0x38] sm:$0xf]
          %v317 = vld [vmem:[%s2 + $0x3c] sm:$0xf]
          %v318 = vld [vmem:[%s3] sm:$0x1]
          %v320 = vlaneseq
          %v321 = vshrl.u32 %v320, 7
          %v322 = vsub.s32 0, %v321
          %v323 = vrot.slane %v318, %v322
          %v327 = vunpack.c.l.b16 %v300
          %v328 = vunpack.c.l.b16 %v301
          %v329 = vpack.c.b16 %v328, %v327
          %v347 = vunpack.c.l.b16 %v302
          %v348 = vunpack.c.l.b16 %v303
          %v349 = vunpack.c.l.b16 %v304
          %v350 = vunpack.c.l.b16 %v305
          %v351 = vunpack.c.l.b16 %v306
          %v352 = vunpack.c.l.b16 %v307
          %v353 = vunpack.c.l.b16 %v308
          %v354 = vunpack.c.l.b16 %v309
          %v355 = vunpack.c.l.b16 %v310
          %v356 = vunpack.c.l.b16 %v311
          %v357 = vunpack.c.l.b16 %v312
          %v358 = vunpack.c.l.b16 %v313
          %v359 = vunpack.c.l.b16 %v314
          %v360 = vunpack.c.l.b16 %v315
          %v361 = vunpack.c.l.b16 %v316
          %v362 = vunpack.c.l.b16 %v317
          %v363 = vpack.c.b16 %v348, %v347
          %v364 = vpack.c.b16 %v350, %v349
          %v365 = vpack.c.b16 %v352, %v351
          %v366 = vpack.c.b16 %v354, %v353
          %v367 = vpack.c.b16 %v356, %v355
          %v368 = vpack.c.b16 %v358, %v357
          %v369 = vpack.c.b16 %v360, %v359
          %v370 = vpack.c.b16 %v362, %v361
          %379 = vmatprep.subr.bf16.mxu0 0
          %380 = vmatpush1.bf16.msra.mxu0 %v363
          %381 = vmatprep.subr.bf16.mxu0 0
          %382 = vmatpush1.bf16.msra.mxu0 %v364
          %383 = vmatprep.subr.bf16.mxu0 0
          %384 = vmatpush1.bf16.msra.mxu0 %v365
          %385 = vmatprep.subr.bf16.mxu0 0
          %386 = vmatpush1.bf16.msra.mxu0 %v366
          %387 = vmatprep.subr.bf16.mxu0 0
          %388 = vmatpush1.bf16.msra.mxu0 %v367
          %389 = vmatprep.subr.bf16.mxu0 0
          %390 = vmatpush1.bf16.msra.mxu0 %v368
          %391 = vmatprep.subr.bf16.mxu0 0
          %392 = vmatpush1.bf16.msra.mxu0 %v369
          %393 = vmatprep.subr.bf16.mxu0 0
          %394 = vmatpush1.bf16.msra.mxu0 %v370
          %395 = vmatprep.subr.bf16.mxu0 0
          %396 = vmatpush1.bf16.msra.mxu0 0
          %397 = vmatprep.subr.bf16.mxu0 0
          %398 = vmatpush1.bf16.msra.mxu0 0
          %399 = vmatprep.subr.bf16.mxu0 0
          %400 = vmatpush1.bf16.msra.mxu0 0
          %401 = vmatprep.subr.bf16.mxu0 0
          %402 = vmatpush1.bf16.msra.mxu0 0
          %403 = vmatprep.subr.bf16.mxu0 0
          %404 = vmatpush1.bf16.msra.mxu0 0
          %405 = vmatprep.subr.bf16.mxu0 0
          %406 = vmatpush1.bf16.msra.mxu0 0
          %407 = vmatprep.subr.bf16.mxu0 0
          %408 = vmatpush1.bf16.msra.mxu0 0
          %409 = vmatprep.subr.bf16.mxu0 0
          %410 = vmatpush1.bf16.msra.mxu0 0
          %411 = vmatprep.mubr.bf16.mxu0 0
          %412 = vmatmul.mubr.bf16.gmra.mrb[0].mxu0 %v329
          %v413 = vpop.f32.mrb[0].mxu0
          %v414 = vadd.f32 %v323, %v413
          %v415 = vpop.f32.mrb[0].mxu0
          %v416 = vpop.f32.mrb[0].mxu0
          %v417 = vadd.f32 %v323, %v416
          %v418 = vpop.f32.mrb[0].mxu0
          %419 = vdwg.mxu0
          %v420 = vld [vmem:[%s266] sm:$0xff]
          %v421 = vld [vmem:[%s266 + $0x8] sm:$0xff]
          %s422 = smul.u32 %s25, 128
          %v423 = vlaneseq
          %v424 = vand.u32 %v423, 127
          %v425 = vstv %s422
          %v426 = vadd.s32 %v425, %v424
          %v427 = vld [vmem:[#allocation2] sm:$0xff]
          %v428 = vld [vmem:[#allocation2 + $0x8] sm:$0xff]
          %429 = vmax.xlane.f32.xlu0 %v414
          %v430 = vpop.xlane.xlu0 %429
          %431 = vmax.xlane.f32.xlu0 %v417
          %v432 = vpop.xlane.xlu0 %431
          %v433 = vmax.f32 %v427, %v430
          %v434 = vmax.f32 %v428, %v432
          %v435 = vld [vmem:[#allocation3] sm:$0xff]
          %v436 = vld [vmem:[#allocation3 + $0x8] sm:$0xff]
          %v437 = vsub.f32 %v427, %v433
          %v438 = vsub.f32 %v428, %v434
          %v439 = vmul.f32 %v437, 1.442695
          %v440 = vpow.pop %v439
          %v441 = vmul.f32 %v438, 1.442695
          %v442 = vpow.pop %v441
          %v443 = vmul.f32 %v435, %v440
          %v444 = vmul.f32 %v436, %v442
          %446 = vset.pattern.permute.xlu0 0
          %447 = vperm.xlu0 %446, %v433
          %v448 = vpop.permute.xlu0 %447
          %451 = vset.pattern.permute.xlu0 0
          %452 = vperm.xlu0 %451, %v434
          %v453 = vpop.permute.xlu0 %452
          %v455 = vsub.f32 %v414, %v448
          %v456 = vsub.f32 %v417, %v453
          %v457 = vmul.f32 %v455, 1.442695
          %v458 = vpow.pop %v457
          %v459 = vmul.f32 %v456, 1.442695
          %v460 = vpow.pop %v459
          %461 = vadd.xlane.f32.xlu0 %v458
          %v462 = vpop.xlane.xlu0 %461
          %463 = vadd.xlane.f32.xlu0 %v460
          %v464 = vpop.xlane.xlu0 %463
          %v465 = vadd.f32 %v443, %v462
          %v466 = vadd.f32 %v444, %v464
          %vm467 = vcmask 7168
          %468 = vst.msk [vmem:[#allocation3] sm:$0xff] %vm467, %v465
          %469 = vst.msk [vmem:[#allocation3 + $0x8] sm:$0xff] %vm467, %v466
          %470 = vst.msk [vmem:[#allocation2] sm:$0xff] %vm467, %v433
          %471 = vst.msk [vmem:[#allocation2 + $0x8] sm:$0xff] %vm467, %v434
          %v472 = vld [vmem:[#allocation5] sm:$0xff]
          %v473 = vld [vmem:[#allocation5 + $0x8] sm:$0xff]
          %474 = vadd.xlane.f32.xlu0 %v414
          %v475 = vpop.xlane.xlu0 %474
          %476 = vadd.xlane.f32.xlu0 %v417
          %v477 = vpop.xlane.xlu0 %476
          %v478 = vadd.f32 %v472, %v475
          %v479 = vadd.f32 %v473, %v477
          %480 = vst.msk [vmem:[#allocation5] sm:$0xff] %vm467, %v478
          %481 = vst.msk [vmem:[#allocation5 + $0x8] sm:$0xff] %vm467, %v479
          %v482 = vld [vmem:[#allocation4] sm:$0xff]
          %v483 = vld [vmem:[#allocation4 + $0x8] sm:$0xff]
          %484 = vset.pattern.permute.xlu0 0
          %485 = vperm.xlu0 %484, %v420
          %v486 = vpop.permute.xlu0 %485
          %487 = vset.pattern.permute.xlu0 0
          %488 = vperm.xlu0 %487, %v421
          %v489 = vpop.permute.xlu0 %488
          %vm490 = vcmp.eq.s32.totalorder %v426, %v486
          %vm491 = vcmp.eq.s32.totalorder %v426, %v489
          %v492 = vsel %vm490, %v414, 0.0
          %v493 = vsel %vm491, %v417, 0.0
          %494 = vadd.xlane.f32.xlu0 %v492
          %v495 = vpop.xlane.xlu0 %494
          %496 = vadd.xlane.f32.xlu0 %v493
          %v497 = vpop.xlane.xlu0 %496
          %v498 = vadd.f32 %v482, %v495
          %v499 = vadd.f32 %v483, %v497
          %500 = vst.msk [vmem:[#allocation4] sm:$0xff] %vm467, %v498
          %501 = vst.msk [vmem:[#allocation4 + $0x8] sm:$0xff] %vm467, %v499
        $region44: #{main_model_forward.1} parent=35 // pred_fallthru
          _
        // Predicated region
        $region45: #{main_model_forward.1} parent=35 // pred_check
          %p502 = pneg %p283
        $region46: #{main_model_forward.1} parent=35 // pred_check_branch
          %504 = sbr.rel (%p502) target = $region48
        $region47: #{main_model_forward.1} parent=35 // pred_region
          %v505 = vld [vmem:[#allocation2] sm:$0xff]
          %v506 = vld [vmem:[#allocation2 + $0x8] sm:$0xff]
          %v507 = vld [vmem:[#allocation3] sm:$0xff]
          %v508 = vld [vmem:[#allocation3 + $0x8] sm:$0xff]
          %v509 = vlog2.pop %v507
          %v510 = vmul.f32 %v509, 0.6931472
          %v511 = vlog2.pop %v508
          %v512 = vmul.f32 %v511, 0.6931472
          %v513 = vadd.f32 %v505, %v510
          %v514 = vadd.f32 %v506, %v512
          %v515 = vld [vmem:[%s266] sm:$0xff]
          %v516 = vld [vmem:[%s266 + $0x8] sm:$0xff]
          %vm517 = vcmp.ne.s32.totalorder %v515, 0
          %vm518 = vcmp.ne.s32.totalorder %v516, 0
          %v519 = vsel %vm517, 1, 0
          %v520 = vsel %vm518, 1, 0
          %v521 = vcvt.s32.f32 %v519
          %v522 = vcvt.s32.f32 %v520
          %v523 = vld [vmem:[#allocation4] sm:$0xff]
          %v524 = vld [vmem:[#allocation4 + $0x8] sm:$0xff]
          %v525 = vsub.f32 %v523, %v513
          %v526 = vsub.f32 %v524, %v514
          %v527 = vsub.f32 0.0, %v525
          %v528 = vsub.f32 0.0, %v526
          %v529 = vmul.f32 %v527, %v521
          %v530 = vmul.f32 %v528, %v522
          %vm531 = vcmask 7168
          %v532 = vsel %vm531, %v529, 0.0
          %v533 = vsel %vm531, %v530, 0.0
          %v534 = vadd.f32 %v532, %v533
          %535 = vadd.xlane.f32.xlu0 %v534
          %v536 = vpop.xlane.xlu0 %535
          %v537 = vrot.slane %v536, 4
          %v538 = vadd.f32 %v536, %v537
          %v539 = vrot.slane %v538, 2
          %v540 = vadd.f32 %v538, %v539
          %v541 = vrot.slane %v540, 1
          %v542 = vadd.f32 %v540, %v541
          %s543 = vtos %v542
          %v544 = vld [vmem:[#allocation5] sm:$0xff]
          %v545 = vld [vmem:[#allocation5 + $0x8] sm:$0xff]
          %v546 = vmul.f32 %v544, 0.0078125
          %v547 = vmul.f32 %v545, 0.0078125
          %v548 = vsub.f32 %v546, %v513
          %v549 = vsub.f32 %v547, %v514
          %v550 = vmul.f32 %v548, %v521
          %v551 = vmul.f32 %v549, %v522
          %v552 = vsel %vm531, %v550, 0.0
          %v553 = vsel %vm531, %v551, 0.0
          %v554 = vadd.f32 %v552, %v553
          %555 = vadd.xlane.f32.xlu0 %v554
          %v556 = vpop.xlane.xlu0 %555
          %v557 = vrot.slane %v556, 4
          %v558 = vadd.f32 %v556, %v557
          %v559 = vrot.slane %v558, 2
          %v560 = vadd.f32 %v558, %v559
          %v561 = vrot.slane %v560, 1
          %v562 = vadd.f32 %v560, %v561
          %s563 = vtos %v562
          %v564 = vlaneseq
          %v565 = vand.u32 %v564, 127
          %v566 = vlaneseq
          %v567 = vshrl.u32 %v566, 7
          %vm568 = vcmp.eq.s32.totalorder %v565, 0
          %vm569 = vcmp.eq.s32.totalorder %v565, 1
          %v570 = vstv %s563
          %v571 = vsel %vm569, %v570, 0.0
          %v572 = vstv %s543
          %v573 = vsel %vm568, %v572, %v571
          %vm574 = vcmp.eq.s32.totalorder %v567, 0
          %v575 = vsel %vm574, %v573, 0.0
          %576 = vst [vmem:[%s281] sm:$0xff] %v575
        $region48: #{main_model_forward.1} parent=35 // pred_fallthru
          _
        %p577 = scmp.ge.s32.totalorder %s25, 1
        // Predicated region
        $region49: #{main_model_forward.1} parent=35 // pred_check
          %p578 = pneg %p577
        $region50: #{main_model_forward.1} parent=35 // pred_check_branch
          %580 = sbr.rel (%p578) target = $region52
        $region51: #{main_model_forward.1} parent=35 // pred_region
          %v581 = vld [vmem:[%s272] sm:$0xf]
          %v582 = vld [vmem:[%s272 + $0x4] sm:$0xf]
          %v583 = vld [vmem:[%s2] sm:$0xf]
          %v584 = vld [vmem:[%s2 + $0x4] sm:$0xf]
          %v585 = vld [vmem:[%s2 + $0x8] sm:$0xf]
          %v586 = vld [vmem:[%s2 + $0xc] sm:$0xf]
          %v587 = vld [vmem:[%s2 + $0x10] sm:$0xf]
          %v588 = vld [vmem:[%s2 + $0x14] sm:$0xf]
          %v589 = vld [vmem:[%s2 + $0x18] sm:$0xf]
          %v590 = vld [vmem:[%s2 + $0x1c] sm:$0xf]
          %v591 = vld [vmem:[%s2 + $0x20] sm:$0xf]
          %v592 = vld [vmem:[%s2 + $0x24] sm:$0xf]
          %v593 = vld [vmem:[%s2 + $0x28] sm:$0xf]
          %v594 = vld [vmem:[%s2 + $0x2c] sm:$0xf]
          %v595 = vld [vmem:[%s2 + $0x30] sm:$0xf]
          %v596 = vld [vmem:[%s2 + $0x34] sm:$0xf]
          %v597 = vld [vmem:[%s2 + $0x38] sm:$0xf]
          %v598 = vld [vmem:[%s2 + $0x3c] sm:$0xf]
          %v599 = vld [vmem:[%s3] sm:$0x1]
          %v601 = vlaneseq
          %v602 = vshrl.u32 %v601, 7
          %v603 = vsub.s32 0, %v602
          %v604 = vrot.slane %v599, %v603
          %v608 = vunpack.c.l.b16 %v581
          %v609 = vunpack.c.l.b16 %v582
          %v610 = vpack.c.b16 %v609, %v608
          %v628 = vunpack.c.l.b16 %v583
          %v629 = vunpack.c.l.b16 %v584
          %v630 = vunpack.c.l.b16 %v585
          %v631 = vunpack.c.l.b16 %v586
          %v632 = vunpack.c.l.b16 %v587
          %v633 = vunpack.c.l.b16 %v588
          %v634 = vunpack.c.l.b16 %v589
          %v635 = vunpack.c.l.b16 %v590
          %v636 = vunpack.c.l.b16 %v591
          %v637 = vunpack.c.l.b16 %v592
          %v638 = vunpack.c.l.b16 %v593
          %v639 = vunpack.c.l.b16 %v594
          %v640 = vunpack.c.l.b16 %v595
          %v641 = vunpack.c.l.b16 %v596
          %v642 = vunpack.c.l.b16 %v597
          %v643 = vunpack.c.l.b16 %v598
          %v644 = vpack.c.b16 %v629, %v628
          %v645 = vpack.c.b16 %v631, %v630
          %v646 = vpack.c.b16 %v633, %v632
          %v647 = vpack.c.b16 %v635, %v634
          %v648 = vpack.c.b16 %v637, %v636
          %v649 = vpack.c.b16 %v639, %v638
          %v650 = vpack.c.b16 %v641, %v640
          %v651 = vpack.c.b16 %v643, %v642
          %660 = vmatprep.subr.bf16.mxu0 0
          %661 = vmatpush1.bf16.msra.mxu0 %v644
          %662 = vmatprep.subr.bf16.mxu0 0
          %663 = vmatpush1.bf16.msra.mxu0 %v645
          %664 = vmatprep.subr.bf16.mxu0 0
          %665 = vmatpush1.bf16.msra.mxu0 %v646
          %666 = vmatprep.subr.bf16.mxu0 0
          %667 = vmatpush1.bf16.msra.mxu0 %v647
          %668 = vmatprep.subr.bf16.mxu0 0
          %669 = vmatpush1.bf16.msra.mxu0 %v648
          %670 = vmatprep.subr.bf16.mxu0 0
          %671 = vmatpush1.bf16.msra.mxu0 %v649
          %672 = vmatprep.subr.bf16.mxu0 0
          %673 = vmatpush1.bf16.msra.mxu0 %v650
          %674 = vmatprep.subr.bf16.mxu0 0
          %675 = vmatpush1.bf16.msra.mxu0 %v651
          %676 = vmatprep.subr.bf16.mxu0 0
          %677 = vmatpush1.bf16.msra.mxu0 0
          %678 = vmatprep.subr.bf16.mxu0 0
          %679 = vmatpush1.bf16.msra.mxu0 0
          %680 = vmatprep.subr.bf16.mxu0 0
          %681 = vmatpush1.bf16.msra.mxu0 0
          %682 = vmatprep.subr.bf16.mxu0 0
          %683 = vmatpush1.bf16.msra.mxu0 0
          %684 = vmatprep.subr.bf16.mxu0 0
          %685 = vmatpush1.bf16.msra.mxu0 0
          %686 = vmatprep.subr.bf16.mxu0 0
          %687 = vmatpush1.bf16.msra.mxu0 0
          %688 = vmatprep.subr.bf16.mxu0 0
          %689 = vmatpush1.bf16.msra.mxu0 0
          %690 = vmatprep.subr.bf16.mxu0 0
          %691 = vmatpush1.bf16.msra.mxu0 0
          %692 = vmatprep.mubr.bf16.mxu0 0
          %693 = vmatmul.mubr.bf16.gmra.mrb[0].mxu0 %v610
          %v694 = vpop.f32.mrb[0].mxu0
          %v695 = vadd.f32 %v604, %v694
          %v696 = vpop.f32.mrb[0].mxu0
          %v697 = vpop.f32.mrb[0].mxu0
          %v698 = vadd.f32 %v604, %v697
          %v699 = vpop.f32.mrb[0].mxu0
          %700 = vdwg.mxu0
          %v701 = vld [vmem:[#allocation2] sm:$0xff]
          %v702 = vld [vmem:[#allocation2 + $0x8] sm:$0xff]
          %v703 = vld [vmem:[#allocation3] sm:$0xff]
          %v704 = vld [vmem:[#allocation3 + $0x8] sm:$0xff]
          %v705 = vlog2.pop %v703
          %v706 = vmul.f32 %v705, 0.6931472
          %v707 = vlog2.pop %v704
          %v708 = vmul.f32 %v707, 0.6931472
          %v709 = vadd.f32 %v701, %v706
          %v710 = vadd.f32 %v702, %v708
          %712 = vset.pattern.permute.xlu0 0
          %713 = vperm.xlu0 %712, %v709
          %v714 = vpop.permute.xlu0 %713
          %717 = vset.pattern.permute.xlu0 0
          %718 = vperm.xlu0 %717, %v710
          %v719 = vpop.permute.xlu0 %718
          %v721 = vsub.f32 %v695, %v714
          %v722 = vsub.f32 %v698, %v719
          %723 = vst [vmem:[%s255] sm:$0xff] %v721
          %724 = vst [vmem:[%s255 + $0x8] sm:$0xff] %v722
        $region52: #{main_model_forward.1} parent=35 // pred_fallthru
          _
        %s725 = sand.u32 %s142, 1
        %s726 = scalar_lea.sflag [#allocation7], %s725
        %s727 = sand.u32 %s142, 1
        %s728 = smul.addr %s727, 16
        %s729 = scalar_lea.vmem [#allocation6], %s728
        %p730 = scmp.lt.s32.totalorder %s24, 0
        %s731 = scalar_select %p730, %s24, 0
        %s732 = smul.addr %s731, 8
        %s733 = scalar_lea.vmem %s5, %s732
        // Predicated region
        $region53: #{main_model_forward.1} parent=35 // pred_check
          %p734 = pneg %p152
        $region54: #{main_model_forward.1} parent=35 // pred_check_branch
          %736 = sbr.rel (%p734) target = $region56
        $region55: #{main_model_forward.1} parent=35 // pred_region
          %s737 = ssub.s32 %s25, 1
          %p738 = scmp.gt.s32.totalorder %s737, 0
          %s739 = scalar_select %p738, %s737, 0
          %s740 = smul.u32 2, %s24
          %s742 = ssub.s32 256, 256
          %743 = vsyncadd %s726, %s742
          %s744 = sadd.s32 %s739, %s740
          %s745 = smul.addr %s744, 128
          %s746 = scalar_lea.hbm %s4, %s745
          %s747 = sshll.u32 %s729, 4
          %s748 = int_to_ptr.vmem [resolvable:$true] %s747
          %753 = dma.vmem_to_hbm [thread:$0]  %s748, 256, %s746, %s726, 128, 128, 8
        $region56: #{main_model_forward.1} parent=35 // pred_fallthru
          _
        // Predicated region
        $region57: #{main_model_forward.1} parent=35 // pred_check
          %p754 = pneg %p178
        $region58: #{main_model_forward.1} parent=35 // pred_check_branch
          %756 = sbr.rel (%p754) target = $region60
        $region59: #{main_model_forward.1} parent=35 // pred_region
          _
        $region60: #{main_model_forward.1} parent=35 // pred_fallthru
          _
        // Predicated region
        $region61: #{main_model_forward.1} parent=35 // pred_check
          %p757 = pneg %p178
        $region62: #{main_model_forward.1} parent=35 // pred_check_branch
          %759 = sbr.rel (%p757) target = $region64
        $region63: #{main_model_forward.1} parent=35 // pred_region
          %p760 = scmp.lt.s32.totalorder %s24, 0
          %s761 = scalar_select %p760, %s24, 0
          %s762 = smul.addr %s761, 8
          %s763 = scalar_lea.vmem %s5, %s762
        $region64: #{main_model_forward.1} parent=35 // pred_fallthru
          _
      $region36: #{main_model_forward.1} parent=5 // pred_fallthru
        _
      %p764 = scmp.le.s32.totalorder 2, %s15
      // Predicated region
      $region65: #{main_model_forward.1} parent=5 // pred_check
        %p765 = pneg %p764
      $region66: #{main_model_forward.1} parent=5 // pred_check_branch
        %767 = sbr.rel (%p765) target = $region68
      $region67: #{main_model_forward.1} parent=5 // pred_region
        %s768 = ssub.s32 %s15, 2
        // Predicated region
        $region69: #{main_model_forward.1} parent=67 // pred_check
          %p769 = pneg %p158
        $region70: #{main_model_forward.1} parent=67 // pred_check_branch
          %771 = sbr.rel (%p769) target = $region72
        $region71: #{main_model_forward.1} parent=67 // pred_region
          %s772 = sand.u32 %s143, 1
          %s773 = scalar_lea.sflag [#allocation7], %s772
          %s774 = sand.u32 %s143, 1
          %s775 = smul.addr %s774, 16
          %s776 = scalar_lea.vmem [#allocation6], %s775
          %777 = dma.done %s773, 256
        $region72: #{main_model_forward.1} parent=67 // pred_fallthru
          _
      $region68: #{main_model_forward.1} parent=5 // pred_fallthru
        _
    $region6: #{main_model_forward.1} parent=1 // loop_footer
      %s19 = sadd.s32 1, %s15
    $region7: #{main_model_forward.1} parent=1 // loop_footer_branch
      %14 = sbr.rel target = $region3
    $region8: #{main_model_forward.1} parent=1 // loop_exit
      _
    %778 = vsyncpa [#allocation7], 1
    %s779 = scalar_lea.sflag [#allocation7], 1
    %780 = vsyncpa %s779, 1

</llo_original>
